<compile_context>
chip_gen: v7x
topology: tpu7x:2x2x1
jax: 0.10.0
libtpu: 0.0.40
codegen_flags: <defaults>
</compile_context>

<pallas_src>
import jax
import jax.numpy as jnp
from jax.experimental import pallas as pl
from jax.experimental.pallas import tpu as pltpu


_DEFAULT_VMEM_BYTES = 64 << 20   # v7x per-TensorCore VMEM (smallest across gens)


def _haar_row_filters(w, dtype):
    """Banded row-pass analysis operands R_lo, R_hi, each (W, W/2).

    pywt 'db1': dec_lo = [s, s], dec_hi = [-s, s] with s = 1/sqrt(2);
    pytorch_wavelets reverses the filters (conv2d is cross-correlation) and the
    column-pass 1/sqrt(2) is folded in here, so every non-zero entry is exactly
    +-0.5 (exact in bf16):
        (v @ R_lo)[j] = 0.5 * (v[2j] + v[2j+1])
        (v @ R_hi)[j] = 0.5 * (v[2j] - v[2j+1])
    """
    w2 = w // 2
    rows = jnp.arange(w)[:, None]
    cols = jnp.arange(w2)[None, :]
    even = rows == 2 * cols
    odd = rows == 2 * cols + 1
    r_lo = jnp.where(even | odd, 0.5, 0.0).astype(dtype)
    r_hi = jnp.where(even, 0.5, jnp.where(odd, -0.5, 0.0)).astype(dtype)
    return r_lo, r_hi


def _block_footprint_bytes(rb, w, itemsize):
    """Per-grid-step VMEM working set for a block of `rb` row pairs."""
    x_blk = 2 * rb * (2 * w) * itemsize          # double-buffered input block
    out_blk = 2 * 4 * rb * (w // 2) * itemsize   # 4 outputs, double-buffered
    tmp = 8 * rb * w * 4                         # s/d + f32 matmul results (slack)
    return x_blk + out_blk + tmp


def _pick_row_block(m, w, itemsize, budget):
    """Row pairs per grid step: largest multiple-of-8 divisor of `m` fitting
    `budget`, preferring >= 2 (even) grid steps (v7x dual-TC) and MXU-friendly
    M multiples (256/128)."""
    if m % 8 != 0:
        return m                                 # full-extent block is always legal
    cands = [d for d in range(8, m + 1, 8) if m % d == 0]
    fitting = [d for d in cands if _block_footprint_bytes(d, w, itemsize) <= budget]
    if not fitting:
        return cands[0]

    def key(d):
        steps = m // d
        return (steps >= 2, steps >= 2 and steps % 2 == 0,
                d % 256 == 0, d % 128 == 0, d)

    return max(fitting, key=key)


def _dwt_haar_kernel(x_ref, rlo_ref, rhi_ref, ll_ref, lh_ref, hl_ref, hh_ref):
    w = rlo_ref.shape[0]
    x = x_ref[...]                               # (Rb, 2W): [row 2i | row 2i+1]
    top = x[:, :w]
    bot = x[:, w:]
    s = top + bot                                # column (H-axis) lowpass  (VPU)
    d = top - bot                                # column (H-axis) highpass (VPU)
    f32 = jnp.float32
    ll_ref[...] = jnp.dot(s, rlo_ref[...], preferred_element_type=f32).astype(ll_ref.dtype)
    hl_ref[...] = jnp.dot(s, rhi_ref[...], preferred_element_type=f32).astype(hl_ref.dtype)
    lh_ref[...] = jnp.dot(d, rlo_ref[...], preferred_element_type=f32).astype(lh_ref.dtype)
    hh_ref[...] = jnp.dot(d, rhi_ref[...], preferred_element_type=f32).astype(hh_ref.dtype)


def _afb2d_pallas(x):
    """One level of the 2-D analysis filter bank (db1, mode='zero')."""
    N, C, H, W = x.shape
    if H % 2 != 0 or W % 2 != 0:
        raise ValueError(
            "DWTForward Pallas kernel (db1, mode='zero') requires even H and W, "
            f"got H={H}, W={W}")
    if x.dtype not in (jnp.float32, jnp.bfloat16):
        x = x.astype(jnp.float32)
    dtype = x.dtype
    itemsize = jnp.dtype(dtype).itemsize

    NC, H2, W2 = N * C, H // 2, W // 2
    M = NC * H2                                   # total output row pairs

    r_lo, r_hi = _haar_row_filters(W, dtype)
    # TODO(synk): for very large W, tile the row pass with the shift-invariant
    # banded sub-filter instead of the dense (W, W/2) operands.

    try:
        vmem_cap = int(pltpu.get_tpu_info().vmem_capacity_bytes)
    except Exception:
        vmem_cap = _DEFAULT_VMEM_BYTES
    r_bytes = 2 * 2 * W * W2 * itemsize           # both filter operands, 2-buffered
    budget = max(4 << 20, (vmem_cap * 3) // 8 - r_bytes)
    rb = _pick_row_block(M, W, itemsize, budget)
    need = _block_footprint_bytes(rb, W, itemsize) + r_bytes + (2 << 20)
    vmem_limit = int(min(max(need, 32 << 20), vmem_cap))

    # Free row-major view: rows 2i and 2i+1 of each plane share one lane row.
    xv = x.reshape(M, 2 * W)

    band = jax.ShapeDtypeStruct((M, W2), dtype)
    ll, lh, hl, hh = pl.pallas_call(
        _dwt_haar_kernel,
        out_shape=[band, band, band, band],
        grid=(M // rb,),
        in_specs=[
            pl.BlockSpec((rb, 2 * W), lambda i: (i, 0)),   # rb row pairs
            pl.BlockSpec((W, W2), lambda i: (0, 0)),        # R_lo (constant)
            pl.BlockSpec((W, W2), lambda i: (0, 0)),        # R_hi (constant)
        ],
        out_specs=[
            pl.BlockSpec((rb, W2), lambda i: (i, 0)),       # LL
            pl.BlockSpec((rb, W2), lambda i: (i, 0)),       # LH
            pl.BlockSpec((rb, W2), lambda i: (i, 0)),       # HL
            pl.BlockSpec((rb, W2), lambda i: (i, 0)),       # HH
        ],
        compiler_params=pltpu.CompilerParams(
            dimension_semantics=("parallel",),
            vmem_limit_bytes=vmem_limit,
        ),
    )(xv, r_lo, r_hi)

    ll = ll.reshape(N, C, H2, W2)
    # TODO(synk): the stack below is one extra XLA pass over the three high
    # bands; emitting the (N, C, 3, H2, W2) layout in-kernel needs plane-aligned
    # blocks + an in-kernel value reshape and is left out for lowering robustness.
    yh = jnp.stack([lh.reshape(N, C, H2, W2),
                    hl.reshape(N, C, H2, W2),
                    hh.reshape(N, C, H2, W2)], axis=2)      # pytorch_wavelets order
    return ll, yh


def dwt_forward(x, J=1):
    """Equivalent of DWTForward(J=J, wave='db1', mode='zero').forward(x)."""
    # TODO(synk): only wave='db1' with mode='zero' and even spatial dims is
    # supported (the module defaults); other wavelets/modes need general banded
    # analysis matrices and boundary handling instead of the Haar butterfly.
    ll = x
    yh = []
    for _ in range(J):
        ll, high = _afb2d_pallas(ll)
        yh.append(high)
    return ll, yh


def _reference_haar(x):
    # Pure-JAX reference for db1 / zero mode, even H & W.
    N, C, H, W = x.shape
    xr = x.reshape(N, C, H // 2, 2, W // 2, 2)
    a = xr[:, :, :, 0, :, 0]
    b = xr[:, :, :, 0, :, 1]
    c = xr[:, :, :, 1, :, 0]
    d = xr[:, :, :, 1, :, 1]
    ll = (a + b + c + d) * 0.5
    band0 = (a + b - c - d) * 0.5   # LH: row-lo, col-hi
    band1 = (a - b + c - d) * 0.5   # HL: row-hi, col-lo
    band2 = (a - b - c + d) * 0.5   # HH: row-hi, col-hi
    return ll, jnp.stack([band0, band1, band2], axis=2)


if __name__ == "__main__":
    key = jax.random.PRNGKey(0)
    x = jax.random.normal(key, (2, 4, 16, 16), dtype=jnp.float32)

    ll, yh = dwt_forward(x, J=1)
    ll = jax.block_until_ready(ll)
    yh0 = jax.block_until_ready(yh[0])

    assert ll.shape == (2, 4, 8, 8)
    assert yh0.shape == (2, 4, 3, 8, 8)

    ll_ref, yh_ref = _reference_haar(x)
    assert jnp.allclose(ll, ll_ref, atol=1e-5), "LL mismatch"
    assert jnp.allclose(yh0, yh_ref, atol=1e-5), "YH mismatch"

    # Exercise the multi-level path (J=2) for shapes as well.
    ll2, yh2 = dwt_forward(x, J=2)
    ll2 = jax.block_until_ready(ll2)
    assert ll2.shape == (2, 4, 4, 4)
    assert len(yh2) == 2 and yh2[1].shape == (2, 4, 3, 4, 4)

    print("KERNEL_OK")
</pallas_src>

<mosaic_0001>
module attributes {stable_mosaic.version = 11 : i64} {
  func.func @_dwt_haar_kernel(%arg0: i32, %arg1: memref<32x32xf32, #tpu.memory_space<vmem>>, %arg2: memref<16x8xf32, #tpu.memory_space<vmem>>, %arg3: memref<16x8xf32, #tpu.memory_space<vmem>>, %arg4: memref<32x8xf32, #tpu.memory_space<vmem>>, %arg5: memref<32x8xf32, #tpu.memory_space<vmem>>, %arg6: memref<32x8xf32, #tpu.memory_space<vmem>>, %arg7: memref<32x8xf32, #tpu.memory_space<vmem>>) attributes {dimension_semantics = [#tpu.dimension_semantics<parallel>], iteration_bounds = array<i64: 2>, scalar_prefetch = 0 : i64, scratch_operands = 0 : i64, tpu.core_type = #tpu.core_type<tc>, window_params = [{transform_indices = @transform_0, window_bounds = array<i64: 32, 32>}, {pipeline_mode = #tpu.pipeline_mode<synchronous>, transform_indices = @transform_1, window_bounds = array<i64: 16, 8>}, {pipeline_mode = #tpu.pipeline_mode<synchronous>, transform_indices = @transform_2, window_bounds = array<i64: 16, 8>}, {transform_indices = @transform_3, window_bounds = array<i64: 32, 8>}, {transform_indices = @transform_4, window_bounds = array<i64: 32, 8>}, {transform_indices = @transform_5, window_bounds = array<i64: 32, 8>}, {transform_indices = @transform_6, window_bounds = array<i64: 32, 8>}]} {
    %c0 = arith.constant 0 : index
    %c0_0 = arith.constant 0 : index
    %0 = vector.load %arg1[%c0, %c0_0] : memref<32x32xf32, #tpu.memory_space<vmem>>, vector<32x32xf32>
    %1 = vector.extract_strided_slice %0 {offsets = [0, 0], sizes = [32, 16], strides = [1, 1]} : vector<32x32xf32> to vector<32x16xf32>
    %2 = vector.extract_strided_slice %0 {offsets = [0, 16], sizes = [32, 16], strides = [1, 1]} : vector<32x32xf32> to vector<32x16xf32>
    %3 = arith.addf %1, %2 : vector<32x16xf32>
    %4 = arith.subf %1, %2 : vector<32x16xf32>
    %c0_1 = arith.constant 0 : index
    %c0_2 = arith.constant 0 : index
    %5 = vector.load %arg2[%c0_1, %c0_2] : memref<16x8xf32, #tpu.memory_space<vmem>>, vector<16x8xf32>
    %cst = arith.constant dense<0.000000e+00> : vector<32x8xf32>
    %6 = tpu.matmul %3, %5, %cst {dimension_numbers = #tpu.dot_dimension_numbers<[1], [0], [0], [1], [0, 0, 1, 1], [], []>} : vector<32x16xf32>, vector<16x8xf32>, vector<32x8xf32> -> vector<32x8xf32>
    %c0_3 = arith.constant 0 : index
    %c0_4 = arith.constant 0 : index
    %7 = vector.load %arg4[%c0_3, %c0_4] : memref<32x8xf32, #tpu.memory_space<vmem>>, vector<32x8xf32>
    tpu.vector_store %arg4[%c0_3, %c0_4], %6 {strides = array<i32>} : memref<32x8xf32, #tpu.memory_space<vmem>>, vector<32x8xf32>,
    %c0_5 = arith.constant 0 : index
    %c0_6 = arith.constant 0 : index
    %8 = vector.load %arg3[%c0_5, %c0_6] : memref<16x8xf32, #tpu.memory_space<vmem>>, vector<16x8xf32>
    %cst_7 = arith.constant dense<0.000000e+00> : vector<32x8xf32>
    %9 = tpu.matmul %3, %8, %cst_7 {dimension_numbers = #tpu.dot_dimension_numbers<[1], [0], [0], [1], [0, 0, 1, 1], [], []>} : vector<32x16xf32>, vector<16x8xf32>, vector<32x8xf32> -> vector<32x8xf32>
    %c0_8 = arith.constant 0 : index
    %c0_9 = arith.constant 0 : index
    %10 = vector.load %arg6[%c0_8, %c0_9] : memref<32x8xf32, #tpu.memory_space<vmem>>, vector<32x8xf32>
    tpu.vector_store %arg6[%c0_8, %c0_9], %9 {strides = array<i32>} : memref<32x8xf32, #tpu.memory_space<vmem>>, vector<32x8xf32>,
    %c0_10 = arith.constant 0 : index
    %c0_11 = arith.constant 0 : index
    %11 = vector.load %arg2[%c0_10, %c0_11] : memref<16x8xf32, #tpu.memory_space<vmem>>, vector<16x8xf32>
    %cst_12 = arith.constant dense<0.000000e+00> : vector<32x8xf32>
    %12 = tpu.matmul %4, %11, %cst_12 {dimension_numbers = #tpu.dot_dimension_numbers<[1], [0], [0], [1], [0, 0, 1, 1], [], []>} : vector<32x16xf32>, vector<16x8xf32>, vector<32x8xf32> -> vector<32x8xf32>
    %c0_13 = arith.constant 0 : index
    %c0_14 = arith.constant 0 : index
    %13 = vector.load %arg5[%c0_13, %c0_14] : memref<32x8xf32, #tpu.memory_space<vmem>>, vector<32x8xf32>
    tpu.vector_store %arg5[%c0_13, %c0_14], %12 {strides = array<i32>} : memref<32x8xf32, #tpu.memory_space<vmem>>, vector<32x8xf32>,
    %c0_15 = arith.constant 0 : index
    %c0_16 = arith.constant 0 : index
    %14 = vector.load %arg3[%c0_15, %c0_16] : memref<16x8xf32, #tpu.memory_space<vmem>>, vector<16x8xf32>
    %cst_17 = arith.constant dense<0.000000e+00> : vector<32x8xf32>
    %15 = tpu.matmul %4, %14, %cst_17 {dimension_numbers = #tpu.dot_dimension_numbers<[1], [0], [0], [1], [0, 0, 1, 1], [], []>} : vector<32x16xf32>, vector<16x8xf32>, vector<32x8xf32> -> vector<32x8xf32>
    %c0_18 = arith.constant 0 : index
    %c0_19 = arith.constant 0 : index
    %16 = vector.load %arg7[%c0_18, %c0_19] : memref<32x8xf32, #tpu.memory_space<vmem>>, vector<32x8xf32>
    tpu.vector_store %arg7[%c0_18, %c0_19], %15 {strides = array<i32>} : memref<32x8xf32, #tpu.memory_space<vmem>>, vector<32x8xf32>,
    return
  }
  func.func @transform_0(%arg0: i32) -> (i32, i32) {
    %c0_i32 = arith.constant 0 : i32
    %c0_i32_0 = arith.constant 0 : i32
    return %arg0, %c0_i32 : i32, i32
  }
  func.func @transform_1(%arg0: i32) -> (i32, i32) {
    %c0_i32 = arith.constant 0 : i32
    %c0_i32_0 = arith.constant 0 : i32
    %c0_i32_1 = arith.constant 0 : i32
    return %c0_i32, %c0_i32_0 : i32, i32
  }
  func.func @transform_2(%arg0: i32) -> (i32, i32) {
    %c0_i32 = arith.constant 0 : i32
    %c0_i32_0 = arith.constant 0 : i32
    %c0_i32_1 = arith.constant 0 : i32
    return %c0_i32, %c0_i32_0 : i32, i32
  }
  func.func @transform_3(%arg0: i32) -> (i32, i32) {
    %c0_i32 = arith.constant 0 : i32
    %c0_i32_0 = arith.constant 0 : i32
    return %arg0, %c0_i32 : i32, i32
  }
  func.func @transform_4(%arg0: i32) -> (i32, i32) {
    %c0_i32 = arith.constant 0 : i32
    %c0_i32_0 = arith.constant 0 : i32
    return %arg0, %c0_i32 : i32, i32
  }
  func.func @transform_5(%arg0: i32) -> (i32, i32) {
    %c0_i32 = arith.constant 0 : i32
    %c0_i32_0 = arith.constant 0 : i32
    return %arg0, %c0_i32 : i32, i32
  }
  func.func @transform_6(%arg0: i32) -> (i32, i32) {
    %c0_i32 = arith.constant 0 : i32
    %c0_i32_0 = arith.constant 0 : i32
    return %arg0, %c0_i32 : i32, i32
  }
}

</mosaic_0001>

<llo_original>
// kernel: tpu_custom_call.1
$region0: #{tpu_custom_call.1}
  #allocation0 [shape = 'u32[]', space=smem, size = 0x4, offset = 0x4, fixed_abs, tag = 'smem constant byte address 0x4 - core index']
  #allocation1 [shape = 'u32[144,128]{1,0:T(1,128)}', space=vmem, size = 0x12000, scoped, tag = 'internal scratch']
  %s0 = inlined_call_operand.vmem [shape: f32[64,32], index: 0, kind: input, shape index: {}]
  %s1 = inlined_call_operand.vmem [shape: f32[16,8], index: 1, kind: input, shape index: {}]
  %s2 = inlined_call_operand.vmem [shape: f32[16,8], index: 2, kind: input, shape index: {}]
  %s3 = inlined_call_operand.vmem [shape: f32[64,8], index: 3, kind: output, shape index: {0}]
  %s4 = inlined_call_operand.vmem [shape: f32[64,8], index: 4, kind: output, shape index: {1}]
  %s5 = inlined_call_operand.vmem [shape: f32[64,8], index: 5, kind: output, shape index: {2}]
  %s6 = inlined_call_operand.vmem [shape: f32[64,8], index: 6, kind: output, shape index: {3}]
  %7 = xla_tuple %s3, %s4, %s5, %s6
  %s8 = sld [smem:[#allocation0]]
  $region69: #{tpu_custom_call.1} parent=0
    _
  %s10 = ssub.s32 1, %s8
  %s11 = scalar_select 0, %s10, %s8
  loop: start=0, step=1, limit=4
  $region2: #{tpu_custom_call.1} parent=0 // loop_pre_header
    _
  $region3: #{tpu_custom_call.1} parent=0 // loop_header
    %s13 = sphi 0, %s17
    %p14 = scmp.ge.s32.totalorder %s13, 4
    %s23 = sphi 0, %s25
    %s26 = sphi 0, %s23
    %s27 = sphi 0, %s26
    %s43 = sphi 0, %s27
    %s47 = sphi 0, %s47
    %s49 = sphi 0, %s47
    %s50 = sphi 0, %s49
    %s64 = sphi 0, %s50
    %s68 = sphi 0, %s68
    %s70 = sphi 0, %s68
    %s71 = sphi 0, %s70
    %s85 = sphi 0, %s71
    %s91 = sphi 0, %s93
    %s94 = sphi 0, %s91
    %s95 = sphi 0, %s94
    %s111 = sphi 0, %s95
    %s117 = sphi 0, %s119
    %s120 = sphi 0, %s117
    %s121 = sphi 0, %s120
    %s137 = sphi 0, %s121
    %s143 = sphi 0, %s145
    %s146 = sphi 0, %s143
    %s147 = sphi 0, %s146
    %s163 = sphi 0, %s147
    %s169 = sphi 0, %s171
    %s172 = sphi 0, %s169
    %s173 = sphi 0, %s172
    %s189 = sphi 0, %s173
  $region4: #{tpu_custom_call.1} parent=0 // loop_header_branch
    %16 = sbr.rel (%p14) target = $region8
  $region5: #{tpu_custom_call.1} parent=0 // loop_body
    %s18 = ssub.s32 %s13, 1
    %s19 = ssub.s32 %s13, 2
    %s20 = sadd.s32 %s13, 1
    %s21 = ssub.s32 %s13, %s20
    %p22 = scmp.eq.s32.totalorder %s21, 0
    %s24 = sadd.s32 %s23, 1
    %s25 = scalar_select %p22, %s23, %s24
    %p28 = pneg %p22
    %p29 = scmp.eq.s32.totalorder %s13, 1
    %p30 = por %p28, %p29
    %p31 = scmp.ne.s32.totalorder %s23, %s26
    %p32 = scmp.eq.s32.totalorder %s13, 0
    %p33 = por %p31, %p32
    %p34 = scmp.ne.s32.totalorder %s23, %s26
    %p35 = scmp.eq.s32.totalorder %s18, 1
    %p36 = por %p34, %p35
    %p37 = scmp.ne.s32.totalorder %s26, %s27
    %p38 = scmp.eq.s32.totalorder %s18, 0
    %p39 = por %p37, %p38
    %p40 = scmp.ne.s32.totalorder %s26, %s27
    %p41 = scmp.eq.s32.totalorder %s19, 1
    %p42 = por %p40, %p41
    %p44 = scmp.ne.s32.totalorder %s27, %s43
    %p45 = scmp.eq.s32.totalorder %s19, 0
    %p46 = por %p44, %p45
    %s48 = sadd.s32 %s47, 1
    %p51 = scmp.eq.s32.totalorder %s13, 1
    %p52 = scmp.ne.s32.totalorder %s47, %s49
    %p53 = scmp.eq.s32.totalorder %s13, 0
    %p54 = por %p52, %p53
    %p55 = scmp.ne.s32.totalorder %s47, %s49
    %p56 = scmp.eq.s32.totalorder %s18, 1
    %p57 = por %p55, %p56
    %p58 = scmp.ne.s32.totalorder %s49, %s50
    %p59 = scmp.eq.s32.totalorder %s18, 0
    %p60 = por %p58, %p59
    %p61 = scmp.ne.s32.totalorder %s49, %s50
    %p62 = scmp.eq.s32.totalorder %s19, 1
    %p63 = por %p61, %p62
    %p65 = scmp.ne.s32.totalorder %s50, %s64
    %p66 = scmp.eq.s32.totalorder %s19, 0
    %p67 = por %p65, %p66
    %s69 = sadd.s32 %s68, 1
    %p72 = scmp.eq.s32.totalorder %s13, 1
    %p73 = scmp.ne.s32.totalorder %s68, %s70
    %p74 = scmp.eq.s32.totalorder %s13, 0
    %p75 = por %p73, %p74
    %p76 = scmp.ne.s32.totalorder %s68, %s70
    %p77 = scmp.eq.s32.totalorder %s18, 1
    %p78 = por %p76, %p77
    %p79 = scmp.ne.s32.totalorder %s70, %s71
    %p80 = scmp.eq.s32.totalorder %s18, 0
    %p81 = por %p79, %p80
    %p82 = scmp.ne.s32.totalorder %s70, %s71
    %p83 = scmp.eq.s32.totalorder %s19, 1
    %p84 = por %p82, %p83
    %p86 = scmp.ne.s32.totalorder %s71, %s85
    %p87 = scmp.eq.s32.totalorder %s19, 0
    %p88 = por %p86, %p87
    %s89 = ssub.s32 %s13, %s20
    %p90 = scmp.eq.s32.totalorder %s89, 0
    %s92 = sadd.s32 %s91, 1
    %s93 = scalar_select %p90, %s91, %s92
    %p96 = pneg %p90
    %p97 = scmp.eq.s32.totalorder %s13, 1
    %p98 = por %p96, %p97
    %p99 = scmp.ne.s32.totalorder %s91, %s94
    %p100 = scmp.eq.s32.totalorder %s13, 0
    %p101 = por %p99, %p100
    %p102 = scmp.ne.s32.totalorder %s91, %s94
    %p103 = scmp.eq.s32.totalorder %s18, 1
    %p104 = por %p102, %p103
    %p105 = scmp.ne.s32.totalorder %s94, %s95
    %p106 = scmp.eq.s32.totalorder %s18, 0
    %p107 = por %p105, %p106
    %p108 = scmp.ne.s32.totalorder %s94, %s95
    %p109 = scmp.eq.s32.totalorder %s19, 1
    %p110 = por %p108, %p109
    %p112 = scmp.ne.s32.totalorder %s95, %s111
    %p113 = scmp.eq.s32.totalorder %s19, 0
    %p114 = por %p112, %p113
    %s115 = ssub.s32 %s13, %s20
    %p116 = scmp.eq.s32.totalorder %s115, 0
    %s118 = sadd.s32 %s117, 1
    %s119 = scalar_select %p116, %s117, %s118
    %p122 = pneg %p116
    %p123 = scmp.eq.s32.totalorder %s13, 1
    %p124 = por %p122, %p123
    %p125 = scmp.ne.s32.totalorder %s117, %s120
    %p126 = scmp.eq.s32.totalorder %s13, 0
    %p127 = por %p125, %p126
    %p128 = scmp.ne.s32.totalorder %s117, %s120
    %p129 = scmp.eq.s32.totalorder %s18, 1
    %p130 = por %p128, %p129
    %p131 = scmp.ne.s32.totalorder %s120, %s121
    %p132 = scmp.eq.s32.totalorder %s18, 0
    %p133 = por %p131, %p132
    %p134 = scmp.ne.s32.totalorder %s120, %s121
    %p135 = scmp.eq.s32.totalorder %s19, 1
    %p136 = por %p134, %p135
    %p138 = scmp.ne.s32.totalorder %s121, %s137
    %p139 = scmp.eq.s32.totalorder %s19, 0
    %p140 = por %p138, %p139
    %s141 = ssub.s32 %s13, %s20
    %p142 = scmp.eq.s32.totalorder %s141, 0
    %s144 = sadd.s32 %s143, 1
    %s145 = scalar_select %p142, %s143, %s144
    %p148 = pneg %p142
    %p149 = scmp.eq.s32.totalorder %s13, 1
    %p150 = por %p148, %p149
    %p151 = scmp.ne.s32.totalorder %s143, %s146
    %p152 = scmp.eq.s32.totalorder %s13, 0
    %p153 = por %p151, %p152
    %p154 = scmp.ne.s32.totalorder %s143, %s146
    %p155 = scmp.eq.s32.totalorder %s18, 1
    %p156 = por %p154, %p155
    %p157 = scmp.ne.s32.totalorder %s146, %s147
    %p158 = scmp.eq.s32.totalorder %s18, 0
    %p159 = por %p157, %p158
    %p160 = scmp.ne.s32.totalorder %s146, %s147
    %p161 = scmp.eq.s32.totalorder %s19, 1
    %p162 = por %p160, %p161
    %p164 = scmp.ne.s32.totalorder %s147, %s163
    %p165 = scmp.eq.s32.totalorder %s19, 0
    %p166 = por %p164, %p165
    %s167 = ssub.s32 %s13, %s20
    %p168 = scmp.eq.s32.totalorder %s167, 0
    %s170 = sadd.s32 %s169, 1
    %s171 = scalar_select %p168, %s169, %s170
    %p174 = pneg %p168
    %p175 = scmp.eq.s32.totalorder %s13, 1
    %p176 = por %p174, %p175
    %p177 = scmp.ne.s32.totalorder %s169, %s172
    %p178 = scmp.eq.s32.totalorder %s13, 0
    %p179 = por %p177, %p178
    %p180 = scmp.ne.s32.totalorder %s169, %s172
    %p181 = scmp.eq.s32.totalorder %s18, 1
    %p182 = por %p180, %p181
    %p183 = scmp.ne.s32.totalorder %s172, %s173
    %p184 = scmp.eq.s32.totalorder %s18, 0
    %p185 = por %p183, %p184
    %p186 = scmp.ne.s32.totalorder %s172, %s173
    %p187 = scmp.eq.s32.totalorder %s19, 1
    %p188 = por %p186, %p187
    %p190 = scmp.ne.s32.totalorder %s173, %s189
    %p191 = scmp.eq.s32.totalorder %s19, 0
    %p192 = por %p190, %p191
    %p193 = scmp.le.s32.totalorder 1, %s13
    %p194 = scmp.lt.s32.totalorder %s13, 3
    %p195 = pnand %p193, %p194
    %p196 = pneg %p195
    // Predicated region
    $region9: #{tpu_custom_call.1} parent=5 // pred_check
      _
    $region10: #{tpu_custom_call.1} parent=5 // pred_check_branch
      %198 = sbr.rel (%p195) target = $region12
    $region11: #{tpu_custom_call.1} parent=5 // pred_region
      %s199 = ssub.s32 %s13, 1
      // Predicated region
      $region13: #{tpu_custom_call.1} parent=11 // pred_check
        %p200 = pneg %p60
      $region14: #{tpu_custom_call.1} parent=11 // pred_check_branch
        %202 = sbr.rel (%p200) target = $region16
      $region15: #{tpu_custom_call.1} parent=11 // pred_region
        _
      $region16: #{tpu_custom_call.1} parent=11 // pred_fallthru
        _
      // Predicated region
      $region17: #{tpu_custom_call.1} parent=11 // pred_check
        %p203 = pneg %p81
      $region18: #{tpu_custom_call.1} parent=11 // pred_check_branch
        %205 = sbr.rel (%p203) target = $region20
      $region19: #{tpu_custom_call.1} parent=11 // pred_region
        _
      $region20: #{tpu_custom_call.1} parent=11 // pred_fallthru
        _
    $region12: #{tpu_custom_call.1} parent=5 // pred_fallthru
      _
    %p206 = scmp.lt.s32.totalorder %s13, 2
    // Predicated region
    $region21: #{tpu_custom_call.1} parent=5 // pred_check
      %p207 = pneg %p206
    $region22: #{tpu_custom_call.1} parent=5 // pred_check_branch
      %209 = sbr.rel (%p207) target = $region24
    $region23: #{tpu_custom_call.1} parent=5 // pred_region
      // Predicated region
      $region25: #{tpu_custom_call.1} parent=23 // pred_check
        %p210 = pneg %p33
      $region26: #{tpu_custom_call.1} parent=23 // pred_check_branch
        %212 = sbr.rel (%p210) target = $region28
      $region27: #{tpu_custom_call.1} parent=23 // pred_region
        %s213 = smul.u32 4, %s13
        %p214 = scmp.lt.s32.totalorder %s213, 7
        %s215 = scalar_select %p214, %s213, 7
        %s216 = smul.addr %s215, 8
        %s217 = scalar_lea.vmem %s0, %s216
        %s218 = smul.u32 4, %s13
      $region28: #{tpu_custom_call.1} parent=23 // pred_fallthru
        _
    $region24: #{tpu_custom_call.1} parent=5 // pred_fallthru
      _
    %p219 = scmp.le.s32.totalorder 1, %s13
    %p220 = scmp.lt.s32.totalorder %s13, 3
    %p221 = pnand %p219, %p220
    %p222 = pneg %p221
    // Predicated region
    $region29: #{tpu_custom_call.1} parent=5 // pred_check
      _
    $region30: #{tpu_custom_call.1} parent=5 // pred_check_branch
      %224 = sbr.rel (%p221) target = $region32
    $region31: #{tpu_custom_call.1} parent=5 // pred_region
      %s225 = ssub.s32 %s13, 1
      %s226 = smul.u32 4, %s18
      %p227 = scmp.lt.s32.totalorder %s226, 7
      %s228 = scalar_select %p227, %s226, 7
      %s229 = smul.addr %s228, 8
      %s230 = scalar_lea.vmem %s0, %s229
      %p231 = pneg %p39
      %p232 = pneg %p36
      %p233 = pneg %p60
      %p234 = pneg %p57
      %p235 = pneg %p81
      %p236 = pneg %p78
      %p237 = pneg %p107
      %p238 = pneg %p104
      %s239 = smul.u32 4, %s18
      %p240 = scmp.lt.s32.totalorder %s239, 7
      %s241 = scalar_select %p240, %s239, 7
      %s242 = smul.addr %s241, 8
      %s243 = scalar_lea.vmem %s3, %s242
      %p244 = pneg %p133
      %p245 = pneg %p130
      %s246 = smul.u32 4, %s18
      %p247 = scmp.lt.s32.totalorder %s246, 7
      %s248 = scalar_select %p247, %s246, 7
      %s249 = smul.addr %s248, 8
      %s250 = scalar_lea.vmem %s4, %s249
      %p251 = pneg %p159
      %p252 = pneg %p156
      %s253 = smul.u32 4, %s18
      %p254 = scmp.lt.s32.totalorder %s253, 7
      %s255 = scalar_select %p254, %s253, 7
      %s256 = smul.addr %s255, 8
      %s257 = scalar_lea.vmem %s5, %s256
      %p258 = pneg %p185
      %p259 = pneg %p182
      %s260 = smul.u32 4, %s18
      %p261 = scmp.lt.s32.totalorder %s260, 7
      %s262 = scalar_select %p261, %s260, 7
      %s263 = smul.addr %s262, 8
      %s264 = scalar_lea.vmem %s6, %s263
      %s265 = smul.u32 4, %s18
      %p266 = scmp.lt.s32.totalorder %s265, 7
      %s267 = scalar_select %p266, %s265, 7
      %s268 = smul.addr %s267, 8
      %s269 = scalar_lea.vmem %s0, %s268
      %s270 = smul.u32 4, %s18
      %s271 = smul.u32 4, %s18
      %p272 = scmp.lt.s32.totalorder %s271, 7
      %s273 = scalar_select %p272, %s271, 7
      %s274 = smul.addr %s273, 8
      %s275 = scalar_lea.vmem %s3, %s274
      %s276 = smul.u32 4, %s18
      %s277 = smul.u32 4, %s18
      %p278 = scmp.lt.s32.totalorder %s277, 7
      %s279 = scalar_select %p278, %s277, 7
      %s280 = smul.addr %s279, 8
      %s281 = scalar_lea.vmem %s4, %s280
      %s282 = smul.u32 4, %s18
      %s283 = smul.u32 4, %s18
      %p284 = scmp.lt.s32.totalorder %s283, 7
      %s285 = scalar_select %p284, %s283, 7
      %s286 = smul.addr %s285, 8
      %s287 = scalar_lea.vmem %s5, %s286
      %s288 = smul.u32 4, %s18
      %s289 = smul.u32 4, %s18
      %p290 = scmp.lt.s32.totalorder %s289, 7
      %s291 = scalar_select %p290, %s289, 7
      %s292 = smul.addr %s291, 8
      %s293 = scalar_lea.vmem %s6, %s292
      %s294 = smul.u32 4, %s18
      %v295 = vld [vmem:[%s269] sm:$0xff]
      %v296 = vld [vmem:[%s269 + $0x8] sm:$0xff]
      %v297 = vld [vmem:[%s269 + $0x10] sm:$0xff]
      %v298 = vld [vmem:[%s269 + $0x18] sm:$0xff]
      %303 = vrot.lane.b32.xlu0 %v295, 112
      %v304 = vpop.permute.xlu0 %303
      %305 = vrot.lane.b32.xlu0 %v296, 112
      %v306 = vpop.permute.xlu0 %305
      %307 = vrot.lane.b32.xlu0 %v297, 112
      %v308 = vpop.permute.xlu0 %307
      %309 = vrot.lane.b32.xlu0 %v298, 112
      %v310 = vpop.permute.xlu0 %309
      %v315 = vadd.f32 %v295, %v304
      %v316 = vadd.f32 %v296, %v306
      %v317 = vadd.f32 %v297, %v308
      %v318 = vadd.f32 %v298, %v310
      %v319 = vsub.f32 %v295, %v304
      %v320 = vsub.f32 %v296, %v306
      %v321 = vsub.f32 %v297, %v308
      %v322 = vsub.f32 %v298, %v310
      %v323 = vld [vmem:[%s1] sm:$0xff]
      %v324 = vld [vmem:[%s1 + $0x8] sm:$0xff]
      %vm325 = vcmask 130048
      %v327 = vsel %vm325, %v315, 0
      %v330 = vsel %vm325, %v316, 0
      %v333 = vsel %vm325, %v317, 0
      %v336 = vsel %vm325, %v318, 0
      %338 = vmatprep.subr.mxu0 0.0
      %339 = vmatpush1.msra.mxu0 %v323
      %340 = vmatprep.subr.mxu0 0.0
      %341 = vmatpush1.msra.mxu0 %v324
      %342 = vmatprep.subr.mxu0 0.0
      %343 = vmatpush1.msra.mxu0 0.0
      %344 = vmatprep.subr.mxu0 0.0
      %345 = vmatpush1.msra.mxu0 0.0
      %346 = vmatprep.subr.mxu0 0.0
      %347 = vmatpush1.msra.mxu0 0.0
      %348 = vmatprep.subr.mxu0 0.0
      %349 = vmatpush1.msra.mxu0 0.0
      %350 = vmatprep.subr.mxu0 0.0
      %351 = vmatpush1.msra.mxu0 0.0
      %352 = vmatprep.subr.mxu0 0.0
      %353 = vmatpush1.msra.mxu0 0.0
      %354 = vmatprep.subr.mxu0 0.0
      %355 = vmatpush1.msra.mxu0 0.0
      %356 = vmatprep.subr.mxu0 0.0
      %357 = vmatpush1.msra.mxu0 0.0
      %358 = vmatprep.subr.mxu0 0.0
      %359 = vmatpush1.msra.mxu0 0.0
      %360 = vmatprep.subr.mxu0 0.0
      %361 = vmatpush1.msra.mxu0 0.0
      %362 = vmatprep.subr.mxu0 0.0
      %363 = vmatpush1.msra.mxu0 0.0
      %364 = vmatprep.subr.mxu0 0.0
      %365 = vmatpush1.msra.mxu0 0.0
      %366 = vmatprep.subr.mxu0 0.0
      %367 = vmatpush1.msra.mxu0 0.0
      %368 = vmatprep.subr.mxu0 0.0
      %369 = vmatpush1.msra.mxu0 0.0
      %370 = vmatprep.subr.mxu0 0.0
      %371 = vmatpush1.msra.mxu0 0.0
      %372 = vmatprep.subr.mxu0 0.0
      %373 = vmatpush1.msra.mxu0 0.0
      %374 = vmatprep.subr.mxu0 0.0
      %375 = vmatpush1.msra.mxu0 0.0
      %376 = vmatprep.subr.mxu0 0.0
      %377 = vmatpush1.msra.mxu0 0.0
      %378 = vmatprep.subr.mxu0 0.0
      %379 = vmatpush1.msra.mxu0 0.0
      %380 = vmatprep.subr.mxu0 0.0
      %381 = vmatpush1.msra.mxu0 0.0
      %382 = vmatprep.subr.mxu0 0.0
      %383 = vmatpush1.msra.mxu0 0.0
      %384 = vmatprep.subr.mxu0 0.0
      %385 = vmatpush1.msra.mxu0 0.0
      %386 = vmatprep.subr.mxu0 0.0
      %387 = vmatpush1.msra.mxu0 0.0
      %388 = vmatprep.subr.mxu0 0.0
      %389 = vmatpush1.msra.mxu0 0.0
      %390 = vmatprep.subr.mxu0 0.0
      %391 = vmatpush1.msra.mxu0 0.0
      %392 = vmatprep.subr.mxu0 0.0
      %393 = vmatpush1.msra.mxu0 0.0
      %394 = vmatprep.subr.mxu0 0.0
      %395 = vmatpush1.msra.mxu0 0.0
      %396 = vmatprep.subr.mxu0 0.0
      %397 = vmatpush1.msra.mxu0 0.0
      %398 = vmatprep.subr.mxu0 0.0
      %399 = vmatpush1.msra.mxu0 0.0
      %400 = vmatprep.subr.mxu0 0.0
      %401 = vmatpush1.msra.mxu0 0.0
      %402 = vmatprep.mubr.f32.mxu0 0.0
      %403 = vmatmul.mubr.f32.gmra.mrb[0].mxu0 %v327
      %v404 = vpop.f32.mrb[0].mxu0
      %v405 = vadd.f32 0.0, %v404
      %v406 = vpop.f32.mrb[0].mxu0
      %407 = vmatprep.mubr.f32.mxu0 0.0
      %408 = vmatmul.mubr.f32.gmra.mrb[0].mxu0 %v330
      %v409 = vpop.f32.mrb[0].mxu0
      %v410 = vadd.f32 0.0, %v409
      %v411 = vpop.f32.mrb[0].mxu0
      %412 = vmatprep.mubr.f32.mxu0 0.0
      %413 = vmatmul.mubr.f32.gmra.mrb[0].mxu0 %v333
      %v414 = vpop.f32.mrb[0].mxu0
      %v415 = vadd.f32 0.0, %v414
      %v416 = vpop.f32.mrb[0].mxu0
      %417 = vmatprep.mubr.f32.mxu0 0.0
      %418 = vmatmul.mubr.f32.gmra.mrb[0].mxu0 %v336
      %v419 = vpop.f32.mrb[0].mxu0
      %v420 = vadd.f32 0.0, %v419
      %v421 = vpop.f32.mrb[0].mxu0
      %422 = vdwg.mxu0
      %vm423 = vcmask 64512
      %424 = vst.msk [vmem:[%s275] sm:$0xff] %vm423, %v405
      %425 = vst.msk [vmem:[%s275 + $0x8] sm:$0xff] %vm423, %v410
      %426 = vst.msk [vmem:[%s275 + $0x10] sm:$0xff] %vm423, %v415
      %427 = vst.msk [vmem:[%s275 + $0x18] sm:$0xff] %vm423, %v420
      %v428 = vld [vmem:[%s2] sm:$0xff]
      %v429 = vld [vmem:[%s2 + $0x8] sm:$0xff]
      %430 = vmatprep.subr.mxu0 0.0
      %431 = vmatpush1.msra.mxu0 %v428
      %432 = vmatprep.subr.mxu0 0.0
      %433 = vmatpush1.msra.mxu0 %v429
      %434 = vmatprep.subr.mxu0 0.0
      %435 = vmatpush1.msra.mxu0 0.0
      %436 = vmatprep.subr.mxu0 0.0
      %437 = vmatpush1.msra.mxu0 0.0
      %438 = vmatprep.subr.mxu0 0.0
      %439 = vmatpush1.msra.mxu0 0.0
      %440 = vmatprep.subr.mxu0 0.0
      %441 = vmatpush1.msra.mxu0 0.0
      %442 = vmatprep.subr.mxu0 0.0
      %443 = vmatpush1.msra.mxu0 0.0
      %444 = vmatprep.subr.mxu0 0.0
      %445 = vmatpush1.msra.mxu0 0.0
      %446 = vmatprep.subr.mxu0 0.0
      %447 = vmatpush1.msra.mxu0 0.0
      %448 = vmatprep.subr.mxu0 0.0
      %449 = vmatpush1.msra.mxu0 0.0
      %450 = vmatprep.subr.mxu0 0.0
      %451 = vmatpush1.msra.mxu0 0.0
      %452 = vmatprep.subr.mxu0 0.0
      %453 = vmatpush1.msra.mxu0 0.0
      %454 = vmatprep.subr.mxu0 0.0
      %455 = vmatpush1.msra.mxu0 0.0
      %456 = vmatprep.subr.mxu0 0.0
      %457 = vmatpush1.msra.mxu0 0.0
      %458 = vmatprep.subr.mxu0 0.0
      %459 = vmatpush1.msra.mxu0 0.0
      %460 = vmatprep.subr.mxu0 0.0
      %461 = vmatpush1.msra.mxu0 0.0
      %462 = vmatprep.subr.mxu0 0.0
      %463 = vmatpush1.msra.mxu0 0.0
      %464 = vmatprep.subr.mxu0 0.0
      %465 = vmatpush1.msra.mxu0 0.0
      %466 = vmatprep.subr.mxu0 0.0
      %467 = vmatpush1.msra.mxu0 0.0
      %468 = vmatprep.subr.mxu0 0.0
      %469 = vmatpush1.msra.mxu0 0.0
      %470 = vmatprep.subr.mxu0 0.0
      %471 = vmatpush1.msra.mxu0 0.0
      %472 = vmatprep.subr.mxu0 0.0
      %473 = vmatpush1.msra.mxu0 0.0
      %474 = vmatprep.subr.mxu0 0.0
      %475 = vmatpush1.msra.mxu0 0.0
      %476 = vmatprep.subr.mxu0 0.0
      %477 = vmatpush1.msra.mxu0 0.0
      %478 = vmatprep.subr.mxu0 0.0
      %479 = vmatpush1.msra.mxu0 0.0
      %480 = vmatprep.subr.mxu0 0.0
      %481 = vmatpush1.msra.mxu0 0.0
      %482 = vmatprep.subr.mxu0 0.0
      %483 = vmatpush1.msra.mxu0 0.0
      %484 = vmatprep.subr.mxu0 0.0
      %485 = vmatpush1.msra.mxu0 0.0
      %486 = vmatprep.subr.mxu0 0.0
      %487 = vmatpush1.msra.mxu0 0.0
      %488 = vmatprep.subr.mxu0 0.0
      %489 = vmatpush1.msra.mxu0 0.0
      %490 = vmatprep.subr.mxu0 0.0
      %491 = vmatpush1.msra.mxu0 0.0
      %492 = vmatprep.subr.mxu0 0.0
      %493 = vmatpush1.msra.mxu0 0.0
      %494 = vmatprep.mubr.f32.mxu0 0.0
      %495 = vmatmul.mubr.f32.gmra.mrb[0].mxu0 %v327
      %v496 = vpop.f32.mrb[0].mxu0
      %v497 = vadd.f32 0.0, %v496
      %v498 = vpop.f32.mrb[0].mxu0
      %499 = vmatprep.mubr.f32.mxu0 0.0
      %500 = vmatmul.mubr.f32.gmra.mrb[0].mxu0 %v330
      %v501 = vpop.f32.mrb[0].mxu0
      %v502 = vadd.f32 0.0, %v501
      %v503 = vpop.f32.mrb[0].mxu0
      %504 = vmatprep.mubr.f32.mxu0 0.0
      %505 = vmatmul.mubr.f32.gmra.mrb[0].mxu0 %v333
      %v506 = vpop.f32.mrb[0].mxu0
      %v507 = vadd.f32 0.0, %v506
      %v508 = vpop.f32.mrb[0].mxu0
      %509 = vmatprep.mubr.f32.mxu0 0.0
      %510 = vmatmul.mubr.f32.gmra.mrb[0].mxu0 %v336
      %v511 = vpop.f32.mrb[0].mxu0
      %v512 = vadd.f32 0.0, %v511
      %v513 = vpop.f32.mrb[0].mxu0
      %514 = vdwg.mxu0
      %515 = vst.msk [vmem:[%s287] sm:$0xff] %vm423, %v497
      %516 = vst.msk [vmem:[%s287 + $0x8] sm:$0xff] %vm423, %v502
      %517 = vst.msk [vmem:[%s287 + $0x10] sm:$0xff] %vm423, %v507
      %518 = vst.msk [vmem:[%s287 + $0x18] sm:$0xff] %vm423, %v512
      %v519 = vld [vmem:[%s1] sm:$0xff]
      %v520 = vld [vmem:[%s1 + $0x8] sm:$0xff]
      %v522 = vsel %vm325, %v319, 0
      %v525 = vsel %vm325, %v320, 0
      %v528 = vsel %vm325, %v321, 0
      %v531 = vsel %vm325, %v322, 0
      %533 = vmatprep.subr.mxu0 0.0
      %534 = vmatpush1.msra.mxu0 %v519
      %535 = vmatprep.subr.mxu0 0.0
      %536 = vmatpush1.msra.mxu0 %v520
      %537 = vmatprep.subr.mxu0 0.0
      %538 = vmatpush1.msra.mxu0 0.0
      %539 = vmatprep.subr.mxu0 0.0
      %540 = vmatpush1.msra.mxu0 0.0
      %541 = vmatprep.subr.mxu0 0.0
      %542 = vmatpush1.msra.mxu0 0.0
      %543 = vmatprep.subr.mxu0 0.0
      %544 = vmatpush1.msra.mxu0 0.0
      %545 = vmatprep.subr.mxu0 0.0
      %546 = vmatpush1.msra.mxu0 0.0
      %547 = vmatprep.subr.mxu0 0.0
      %548 = vmatpush1.msra.mxu0 0.0
      %549 = vmatprep.subr.mxu0 0.0
      %550 = vmatpush1.msra.mxu0 0.0
      %551 = vmatprep.subr.mxu0 0.0
      %552 = vmatpush1.msra.mxu0 0.0
      %553 = vmatprep.subr.mxu0 0.0
      %554 = vmatpush1.msra.mxu0 0.0
      %555 = vmatprep.subr.mxu0 0.0
      %556 = vmatpush1.msra.mxu0 0.0
      %557 = vmatprep.subr.mxu0 0.0
      %558 = vmatpush1.msra.mxu0 0.0
      %559 = vmatprep.subr.mxu0 0.0
      %560 = vmatpush1.msra.mxu0 0.0
      %561 = vmatprep.subr.mxu0 0.0
      %562 = vmatpush1.msra.mxu0 0.0
      %563 = vmatprep.subr.mxu0 0.0
      %564 = vmatpush1.msra.mxu0 0.0
      %565 = vmatprep.subr.mxu0 0.0
      %566 = vmatpush1.msra.mxu0 0.0
      %567 = vmatprep.subr.mxu0 0.0
      %568 = vmatpush1.msra.mxu0 0.0
      %569 = vmatprep.subr.mxu0 0.0
      %570 = vmatpush1.msra.mxu0 0.0
      %571 = vmatprep.subr.mxu0 0.0
      %572 = vmatpush1.msra.mxu0 0.0
      %573 = vmatprep.subr.mxu0 0.0
      %574 = vmatpush1.msra.mxu0 0.0
      %575 = vmatprep.subr.mxu0 0.0
      %576 = vmatpush1.msra.mxu0 0.0
      %577 = vmatprep.subr.mxu0 0.0
      %578 = vmatpush1.msra.mxu0 0.0
      %579 = vmatprep.subr.mxu0 0.0
      %580 = vmatpush1.msra.mxu0 0.0
      %581 = vmatprep.subr.mxu0 0.0
      %582 = vmatpush1.msra.mxu0 0.0
      %583 = vmatprep.subr.mxu0 0.0
      %584 = vmatpush1.msra.mxu0 0.0
      %585 = vmatprep.subr.mxu0 0.0
      %586 = vmatpush1.msra.mxu0 0.0
      %587 = vmatprep.subr.mxu0 0.0
      %588 = vmatpush1.msra.mxu0 0.0
      %589 = vmatprep.subr.mxu0 0.0
      %590 = vmatpush1.msra.mxu0 0.0
      %591 = vmatprep.subr.mxu0 0.0
      %592 = vmatpush1.msra.mxu0 0.0
      %593 = vmatprep.subr.mxu0 0.0
      %594 = vmatpush1.msra.mxu0 0.0
      %595 = vmatprep.subr.mxu0 0.0
      %596 = vmatpush1.msra.mxu0 0.0
      %597 = vmatprep.mubr.f32.mxu0 0.0
      %598 = vmatmul.mubr.f32.gmra.mrb[0].mxu0 %v522
      %v599 = vpop.f32.mrb[0].mxu0
      %v600 = vadd.f32 0.0, %v599
      %v601 = vpop.f32.mrb[0].mxu0
      %602 = vmatprep.mubr.f32.mxu0 0.0
      %603 = vmatmul.mubr.f32.gmra.mrb[0].mxu0 %v525
      %v604 = vpop.f32.mrb[0].mxu0
      %v605 = vadd.f32 0.0, %v604
      %v606 = vpop.f32.mrb[0].mxu0
      %607 = vmatprep.mubr.f32.mxu0 0.0
      %608 = vmatmul.mubr.f32.gmra.mrb[0].mxu0 %v528
      %v609 = vpop.f32.mrb[0].mxu0
      %v610 = vadd.f32 0.0, %v609
      %v611 = vpop.f32.mrb[0].mxu0
      %612 = vmatprep.mubr.f32.mxu0 0.0
      %613 = vmatmul.mubr.f32.gmra.mrb[0].mxu0 %v531
      %v614 = vpop.f32.mrb[0].mxu0
      %v615 = vadd.f32 0.0, %v614
      %v616 = vpop.f32.mrb[0].mxu0
      %617 = vdwg.mxu0
      %618 = vst.msk [vmem:[%s281] sm:$0xff] %vm423, %v600
      %619 = vst.msk [vmem:[%s281 + $0x8] sm:$0xff] %vm423, %v605
      %620 = vst.msk [vmem:[%s281 + $0x10] sm:$0xff] %vm423, %v610
      %621 = vst.msk [vmem:[%s281 + $0x18] sm:$0xff] %vm423, %v615
      %v622 = vld [vmem:[%s2] sm:$0xff]
      %v623 = vld [vmem:[%s2 + $0x8] sm:$0xff]
      %624 = vmatprep.subr.mxu0 0.0
      %625 = vmatpush1.msra.mxu0 %v622
      %626 = vmatprep.subr.mxu0 0.0
      %627 = vmatpush1.msra.mxu0 %v623
      %628 = vmatprep.subr.mxu0 0.0
      %629 = vmatpush1.msra.mxu0 0.0
      %630 = vmatprep.subr.mxu0 0.0
      %631 = vmatpush1.msra.mxu0 0.0
      %632 = vmatprep.subr.mxu0 0.0
      %633 = vmatpush1.msra.mxu0 0.0
      %634 = vmatprep.subr.mxu0 0.0
      %635 = vmatpush1.msra.mxu0 0.0
      %636 = vmatprep.subr.mxu0 0.0
      %637 = vmatpush1.msra.mxu0 0.0
      %638 = vmatprep.subr.mxu0 0.0
      %639 = vmatpush1.msra.mxu0 0.0
      %640 = vmatprep.subr.mxu0 0.0
      %641 = vmatpush1.msra.mxu0 0.0
      %642 = vmatprep.subr.mxu0 0.0
      %643 = vmatpush1.msra.mxu0 0.0
      %644 = vmatprep.subr.mxu0 0.0
      %645 = vmatpush1.msra.mxu0 0.0
      %646 = vmatprep.subr.mxu0 0.0
      %647 = vmatpush1.msra.mxu0 0.0
      %648 = vmatprep.subr.mxu0 0.0
      %649 = vmatpush1.msra.mxu0 0.0
      %650 = vmatprep.subr.mxu0 0.0
      %651 = vmatpush1.msra.mxu0 0.0
      %652 = vmatprep.subr.mxu0 0.0
      %653 = vmatpush1.msra.mxu0 0.0
      %654 = vmatprep.subr.mxu0 0.0
      %655 = vmatpush1.msra.mxu0 0.0
      %656 = vmatprep.subr.mxu0 0.0
      %657 = vmatpush1.msra.mxu0 0.0
      %658 = vmatprep.subr.mxu0 0.0
      %659 = vmatpush1.msra.mxu0 0.0
      %660 = vmatprep.subr.mxu0 0.0
      %661 = vmatpush1.msra.mxu0 0.0
      %662 = vmatprep.subr.mxu0 0.0
      %663 = vmatpush1.msra.mxu0 0.0
      %664 = vmatprep.subr.mxu0 0.0
      %665 = vmatpush1.msra.mxu0 0.0
      %666 = vmatprep.subr.mxu0 0.0
      %667 = vmatpush1.msra.mxu0 0.0
      %668 = vmatprep.subr.mxu0 0.0
      %669 = vmatpush1.msra.mxu0 0.0
      %670 = vmatprep.subr.mxu0 0.0
      %671 = vmatpush1.msra.mxu0 0.0
      %672 = vmatprep.subr.mxu0 0.0
      %673 = vmatpush1.msra.mxu0 0.0
      %674 = vmatprep.subr.mxu0 0.0
      %675 = vmatpush1.msra.mxu0 0.0
      %676 = vmatprep.subr.mxu0 0.0
      %677 = vmatpush1.msra.mxu0 0.0
      %678 = vmatprep.subr.mxu0 0.0
      %679 = vmatpush1.msra.mxu0 0.0
      %680 = vmatprep.subr.mxu0 0.0
      %681 = vmatpush1.msra.mxu0 0.0
      %682 = vmatprep.subr.mxu0 0.0
      %683 = vmatpush1.msra.mxu0 0.0
      %684 = vmatprep.subr.mxu0 0.0
      %685 = vmatpush1.msra.mxu0 0.0
      %686 = vmatprep.subr.mxu0 0.0
      %687 = vmatpush1.msra.mxu0 0.0
      %688 = vmatprep.mubr.f32.mxu0 0.0
      %689 = vmatmul.mubr.f32.gmra.mrb[0].mxu0 %v522
      %v690 = vpop.f32.mrb[0].mxu0
      %v691 = vadd.f32 0.0, %v690
      %v692 = vpop.f32.mrb[0].mxu0
      %693 = vmatprep.mubr.f32.mxu0 0.0
      %694 = vmatmul.mubr.f32.gmra.mrb[0].mxu0 %v525
      %v695 = vpop.f32.mrb[0].mxu0
      %v696 = vadd.f32 0.0, %v695
      %v697 = vpop.f32.mrb[0].mxu0
      %698 = vmatprep.mubr.f32.mxu0 0.0
      %699 = vmatmul.mubr.f32.gmra.mrb[0].mxu0 %v528
      %v700 = vpop.f32.mrb[0].mxu0
      %v701 = vadd.f32 0.0, %v700
      %v702 = vpop.f32.mrb[0].mxu0
      %703 = vmatprep.mubr.f32.mxu0 0.0
      %704 = vmatmul.mubr.f32.gmra.mrb[0].mxu0 %v531
      %v705 = vpop.f32.mrb[0].mxu0
      %v706 = vadd.f32 0.0, %v705
      %v707 = vpop.f32.mrb[0].mxu0
      %708 = vdwg.mxu0
      %709 = vst.msk [vmem:[%s293] sm:$0xff] %vm423, %v691
      %710 = vst.msk [vmem:[%s293 + $0x8] sm:$0xff] %vm423, %v696
      %711 = vst.msk [vmem:[%s293 + $0x10] sm:$0xff] %vm423, %v701
      %712 = vst.msk [vmem:[%s293 + $0x18] sm:$0xff] %vm423, %v706
      %s713 = smul.u32 4, %s18
      %p714 = scmp.lt.s32.totalorder %s713, 7
      %s715 = scalar_select %p714, %s713, 7
      %s716 = smul.addr %s715, 8
      %s717 = scalar_lea.vmem %s3, %s716
      %s718 = smul.u32 4, %s18
      %p719 = scmp.lt.s32.totalorder %s718, 7
      %s720 = scalar_select %p719, %s718, 7
      %s721 = smul.addr %s720, 8
      %s722 = scalar_lea.vmem %s4, %s721
      %s723 = smul.u32 4, %s18
      %p724 = scmp.lt.s32.totalorder %s723, 7
      %s725 = scalar_select %p724, %s723, 7
      %s726 = smul.addr %s725, 8
      %s727 = scalar_lea.vmem %s5, %s726
      %s728 = smul.u32 4, %s18
      %p729 = scmp.lt.s32.totalorder %s728, 7
      %s730 = scalar_select %p729, %s728, 7
      %s731 = smul.addr %s730, 8
      %s732 = scalar_lea.vmem %s6, %s731
      // Predicated region
      $region33: #{tpu_custom_call.1} parent=31 // pred_check
        %p733 = pneg %p104
      $region34: #{tpu_custom_call.1} parent=31 // pred_check_branch
        %735 = sbr.rel (%p733) target = $region36
      $region35: #{tpu_custom_call.1} parent=31 // pred_region
        %s736 = smul.u32 4, %s18
      $region36: #{tpu_custom_call.1} parent=31 // pred_fallthru
        _
      // Predicated region
      $region37: #{tpu_custom_call.1} parent=31 // pred_check
        %p737 = pneg %p130
      $region38: #{tpu_custom_call.1} parent=31 // pred_check_branch
        %739 = sbr.rel (%p737) target = $region40
      $region39: #{tpu_custom_call.1} parent=31 // pred_region
        %s740 = smul.u32 4, %s18
      $region40: #{tpu_custom_call.1} parent=31 // pred_fallthru
        _
      // Predicated region
      $region41: #{tpu_custom_call.1} parent=31 // pred_check
        %p741 = pneg %p156
      $region42: #{tpu_custom_call.1} parent=31 // pred_check_branch
        %743 = sbr.rel (%p741) target = $region44
      $region43: #{tpu_custom_call.1} parent=31 // pred_region
        %s744 = smul.u32 4, %s18
      $region44: #{tpu_custom_call.1} parent=31 // pred_fallthru
        _
      // Predicated region
      $region45: #{tpu_custom_call.1} parent=31 // pred_check
        %p745 = pneg %p182
      $region46: #{tpu_custom_call.1} parent=31 // pred_check_branch
        %747 = sbr.rel (%p745) target = $region48
      $region47: #{tpu_custom_call.1} parent=31 // pred_region
        %s748 = smul.u32 4, %s18
      $region48: #{tpu_custom_call.1} parent=31 // pred_fallthru
        _
    $region32: #{tpu_custom_call.1} parent=5 // pred_fallthru
      _
    %p749 = scmp.le.s32.totalorder 2, %s13
    // Predicated region
    $region49: #{tpu_custom_call.1} parent=5 // pred_check
      %p750 = pneg %p749
    $region50: #{tpu_custom_call.1} parent=5 // pred_check_branch
      %752 = sbr.rel (%p750) target = $region52
    $region51: #{tpu_custom_call.1} parent=5 // pred_region
      %s753 = ssub.s32 %s13, 2
      // Predicated region
      $region53: #{tpu_custom_call.1} parent=51 // pred_check
        %p754 = pneg %p110
      $region54: #{tpu_custom_call.1} parent=51 // pred_check_branch
        %756 = sbr.rel (%p754) target = $region56
      $region55: #{tpu_custom_call.1} parent=51 // pred_region
        %s757 = smul.u32 4, %s19
        %p758 = scmp.lt.s32.totalorder %s757, 7
        %s759 = scalar_select %p758, %s757, 7
        %s760 = smul.addr %s759, 8
        %s761 = scalar_lea.vmem %s3, %s760
      $region56: #{tpu_custom_call.1} parent=51 // pred_fallthru
        _
      // Predicated region
      $region57: #{tpu_custom_call.1} parent=51 // pred_check
        %p762 = pneg %p136
      $region58: #{tpu_custom_call.1} parent=51 // pred_check_branch
        %764 = sbr.rel (%p762) target = $region60
      $region59: #{tpu_custom_call.1} parent=51 // pred_region
        %s765 = smul.u32 4, %s19
        %p766 = scmp.lt.s32.totalorder %s765, 7
        %s767 = scalar_select %p766, %s765, 7
        %s768 = smul.addr %s767, 8
        %s769 = scalar_lea.vmem %s4, %s768
      $region60: #{tpu_custom_call.1} parent=51 // pred_fallthru
        _
      // Predicated region
      $region61: #{tpu_custom_call.1} parent=51 // pred_check
        %p770 = pneg %p162
      $region62: #{tpu_custom_call.1} parent=51 // pred_check_branch
        %772 = sbr.rel (%p770) target = $region64
      $region63: #{tpu_custom_call.1} parent=51 // pred_region
        %s773 = smul.u32 4, %s19
        %p774 = scmp.lt.s32.totalorder %s773, 7
        %s775 = scalar_select %p774, %s773, 7
        %s776 = smul.addr %s775, 8
        %s777 = scalar_lea.vmem %s5, %s776
      $region64: #{tpu_custom_call.1} parent=51 // pred_fallthru
        _
      // Predicated region
      $region65: #{tpu_custom_call.1} parent=51 // pred_check
        %p778 = pneg %p188
      $region66: #{tpu_custom_call.1} parent=51 // pred_check_branch
        %780 = sbr.rel (%p778) target = $region68
      $region67: #{tpu_custom_call.1} parent=51 // pred_region
        %s781 = smul.u32 4, %s19
        %p782 = scmp.lt.s32.totalorder %s781, 7
        %s783 = scalar_select %p782, %s781, 7
        %s784 = smul.addr %s783, 8
        %s785 = scalar_lea.vmem %s6, %s784
      $region68: #{tpu_custom_call.1} parent=51 // pred_fallthru
        _
    $region52: #{tpu_custom_call.1} parent=5 // pred_fallthru
      _
  $region6: #{tpu_custom_call.1} parent=0 // loop_footer
    %s17 = sadd.s32 1, %s13
  $region7: #{tpu_custom_call.1} parent=0 // loop_footer_branch
    %12 = sbr.rel target = $region3
  $region8: #{tpu_custom_call.1} parent=0 // loop_exit
    _

</llo_original>
